<compile_context>
chip_gen: v5e
topology: v5e:2x2
jax: 0.10.0
libtpu: 0.0.40
codegen_flags: <defaults>
</compile_context>

<pallas_src>
import functools
import math

import jax
import jax.numpy as jnp
from jax.experimental import pallas as pl
from jax.experimental.pallas import tpu as pltpu


def _round_up(x, m):
    return (x + m - 1) // m * m


def _tpu_config():
    """Generation-aware sizing with safe fallbacks."""
    vmem_cap = 64 << 20            # conservative fallback (v7x-sized)
    kind = ""
    try:
        vmem_cap = int(pltpu.get_tpu_info().vmem_capacity_bytes)
    except Exception:
        pass
    try:
        kind = jax.devices()[0].device_kind.lower()
    except Exception:
        pass
    if "v7" in kind or "7x" in kind:
        two_tc = True
    elif any(v in kind for v in ("v2", "v3", "v4", "v5", "v6")):
        two_tc = False
    else:
        two_tc = vmem_cap < (100 << 20)
    # Mem-bound kernel: biggest block that keeps 4*block (+headroom) comfortably
    # inside the per-generation VMEM.
    block_budget = (8 << 20) if vmem_cap <= (64 << 20) else (12 << 20)
    return vmem_cap, two_tc, block_budget


def _vmem_limit_bytes(block_bytes, vmem_cap):
    required = 4 * block_bytes + (2 << 20)     # in+out, double-buffered, headroom
    cap = max(int(0.8 * vmem_cap), required)   # never clamp below the requirement
    return min(max(required, 16 << 20), cap)


# ---------------------------------------------------------------------------
# Kernels
# ---------------------------------------------------------------------------

def _channel_conv_sigmoid(y, w_ref, *, kernel_size, pad, c):
    """k-tap zero-padded conv over the channel (sublane) axis + sigmoid.

    y: (B_TILE, C, 1) f32.  Taps are scalars in SMEM -> pure VPU/EUP work.
    """
    if pad > 0:
        z = jnp.zeros((y.shape[0], pad, 1), jnp.float32)
        y = jnp.concatenate([z, y, z], axis=1)            # (B_TILE, C + 2*pad, 1)
    conv = w_ref[0] * y[:, 0:c, :]
    for j in range(1, kernel_size):
        conv = conv + w_ref[j] * y[:, j:j + c, :]
    return jax.nn.sigmoid(conv)


def _eca_fused_kernel(x_ref, w_ref, o_ref, *, kernel_size, pad, hw, c):
    """Single pass: pool + conv + sigmoid + apply on one (B_TILE, C, HW_pad) block."""
    x = x_ref[...]
    # f32-accumulating spatial sum; divide by the TRUE hw (padding lanes are zero).
    y = jnp.sum(x, axis=-1, keepdims=True, dtype=jnp.float32) * (1.0 / hw)
    scale = _channel_conv_sigmoid(y, w_ref, kernel_size=kernel_size, pad=pad, c=c)
    # NOTE: for sub-32-bit x the sigmoid is rounded to x.dtype before the multiply
    # (the reference multiplies in f32); keeps the hot loop cast-free.
    o_ref[...] = x * scale.astype(x.dtype)


def _eca_scale_kernel(x_ref, w_ref, s_ref, acc_ref, *, kernel_size, pad, hw, c):
    """Two-pass, pass A: HW-tiled mean -> conv -> sigmoid -> (B_TILE, C, 1) scale."""
    j = pl.program_id(1)

    @pl.when(j == 0)
    def _():
        acc_ref[...] = jnp.zeros_like(acc_ref)

    acc_ref[...] += jnp.sum(x_ref[...], axis=-1, keepdims=True, dtype=jnp.float32)

    @pl.when(j == pl.num_programs(1) - 1)
    def _():
        y = acc_ref[...] * (1.0 / hw)
        s_ref[...] = _channel_conv_sigmoid(
            y, w_ref, kernel_size=kernel_size, pad=pad, c=c)


def _eca_apply_kernel(x_ref, s_ref, o_ref):
    """Two-pass, pass B: out = x * scale, tiled over (B, HW)."""
    x = x_ref[...]
    o_ref[...] = x * s_ref[...].astype(x.dtype)


# ---------------------------------------------------------------------------
# Wrapper
# ---------------------------------------------------------------------------

def eca_attention(x, conv_weight, kernel_size, *, b_tile=None, hw_tile=None,
                  force_two_pass=False):
    """ECA forward.  x: (B, C, H, W).  conv_weight: (k,) Conv1d(1, 1, k) taps."""
    B, C, H, W = x.shape
    HW = H * W
    pad = (kernel_size - 1) // 2
    itemsize = jnp.dtype(x.dtype).itemsize
    vmem_cap, two_tc, block_budget = _tpu_config()

    # Lane-dense stores: pad HW up to a multiple of 128 (sliced off at the end).
    hw_pad = _round_up(HW, 128)
    x_flat = x.reshape(B, C, HW)
    if hw_pad != HW:
        x_flat = jnp.pad(x_flat, ((0, 0), (0, 0), (0, hw_pad - HW)))

    w = conv_weight.astype(jnp.float32).reshape(kernel_size)
    per_batch = C * hw_pad * itemsize
    two_pass = force_two_pass or (b_tile is None and per_batch > block_budget)

    if not two_pass:
        # ---------------- fused single pass ----------------
        if b_tile is None:
            max_bt = max(1, min(B, block_budget // per_batch))
            if two_tc and B >= 2:
                max_bt = min(max_bt, B // 2)    # keep >= 2 grid steps for 2 TCs
            b_tile = max(d for d in range(1, B + 1)
                         if B % d == 0 and d <= max_bt)
        assert B % b_tile == 0, "b_tile must divide B"
        block_bytes = b_tile * per_batch

        kernel = functools.partial(
            _eca_fused_kernel, kernel_size=kernel_size, pad=pad, hw=HW, c=C)
        cost = pl.CostEstimate(
            flops=2 * B * C * hw_pad + 2 * kernel_size * B * C,
            transcendentals=B * C,
            bytes_accessed=2 * B * C * hw_pad * itemsize + kernel_size * 4)

        out_flat = pl.pallas_call(
            kernel,
            out_shape=jax.ShapeDtypeStruct((B, C, hw_pad), x.dtype),
            grid_spec=pltpu.PrefetchScalarGridSpec(
                num_scalar_prefetch=0,
                grid=(B // b_tile,),
                in_specs=[
                    pl.BlockSpec((b_tile, C, hw_pad), lambda i: (i, 0, 0)),
                    pl.BlockSpec(memory_space=pltpu.MemorySpace.SMEM),  # conv taps
                ],
                out_specs=pl.BlockSpec((b_tile, C, hw_pad), lambda i: (i, 0, 0)),
            ),
            compiler_params=pltpu.CompilerParams(
                dimension_semantics=("parallel",),
                vmem_limit_bytes=_vmem_limit_bytes(block_bytes, vmem_cap),
            ),
            cost_estimate=cost,
        )(x_flat, w)
    else:
        # ---------------- two-pass (large C*HW slab) ----------------
        bt = 1
        if hw_tile is None:
            n128 = hw_pad // 128
            lanes_budget = max(1, block_budget // (C * 128 * itemsize))
            d = max(dd for dd in range(1, n128 + 1)
                    if n128 % dd == 0 and dd <= lanes_budget)
            hw_tile = d * 128
        assert hw_pad % hw_tile == 0 and hw_tile % 128 == 0
        block_bytes = bt * C * hw_tile * itemsize
        vmem_limit = _vmem_limit_bytes(block_bytes, vmem_cap)

        scale_kernel = functools.partial(
            _eca_scale_kernel, kernel_size=kernel_size, pad=pad, hw=HW, c=C)
        scale = pl.pallas_call(
            scale_kernel,
            out_shape=jax.ShapeDtypeStruct((B, C, 1), jnp.float32),
            grid_spec=pltpu.PrefetchScalarGridSpec(
                num_scalar_prefetch=0,
                grid=(B // bt, hw_pad // hw_tile),
                in_specs=[
                    pl.BlockSpec((bt, C, hw_tile), lambda i, j: (i, 0, j)),
                    pl.BlockSpec(memory_space=pltpu.MemorySpace.SMEM),
                ],
                out_specs=pl.BlockSpec((bt, C, 1), lambda i, j: (i, 0, 0)),
                scratch_shapes=[pltpu.VMEM((bt, C, 1), jnp.float32)],
            ),
            compiler_params=pltpu.CompilerParams(
                dimension_semantics=("parallel", "arbitrary"),
                vmem_limit_bytes=vmem_limit,
            ),
            cost_estimate=pl.CostEstimate(
                flops=B * C * hw_pad + 2 * kernel_size * B * C,
                transcendentals=B * C,
                bytes_accessed=B * C * hw_pad * itemsize + B * C * 4),
        )(x_flat, w)

        out_flat = pl.pallas_call(
            _eca_apply_kernel,
            out_shape=jax.ShapeDtypeStruct((B, C, hw_pad), x.dtype),
            grid_spec=pltpu.PrefetchScalarGridSpec(
                num_scalar_prefetch=0,
                grid=(B // bt, hw_pad // hw_tile),
                in_specs=[
                    pl.BlockSpec((bt, C, hw_tile), lambda i, j: (i, 0, j)),
                    pl.BlockSpec((bt, C, 1), lambda i, j: (i, 0, 0)),
                ],
                out_specs=pl.BlockSpec((bt, C, hw_tile), lambda i, j: (i, 0, j)),
            ),
            compiler_params=pltpu.CompilerParams(
                dimension_semantics=("parallel", "parallel"),
                vmem_limit_bytes=vmem_limit,
            ),
            cost_estimate=pl.CostEstimate(
                flops=B * C * hw_pad,
                transcendentals=0,
                bytes_accessed=2 * B * C * hw_pad * itemsize + B * C * 4),
        )(x_flat, scale)

    if hw_pad != HW:
        out_flat = out_flat[:, :, :HW]
    return out_flat.reshape(B, C, H, W)


def _eca_reference(x, conv_weight, kernel_size):
    """Pure-JAX reference mirroring the PyTorch forward."""
    B, C, H, W = x.shape
    pad = (kernel_size - 1) // 2
    y = jnp.mean(x, axis=(2, 3))                          # (B, C)
    y_pad = jnp.pad(y, ((0, 0), (pad, pad)))
    conv = jnp.zeros_like(y)
    for j in range(kernel_size):
        conv = conv + conv_weight[j] * y_pad[:, j:j + C]
    scale = jax.nn.sigmoid(conv)[:, :, None, None]
    return x * scale


if __name__ == "__main__":
    # NCHW input; C=8 -> t=2 -> kernel_size=3, pad=1 (non-trivial channel conv).
    B, C, H, W = 4, 8, 16, 16
    gamma, bias = 2, 1
    t = int(abs((math.log(C, 2) + bias) / gamma))
    kernel_size = t if t % 2 else t + 1

    key = jax.random.PRNGKey(0)
    kx, kw = jax.random.split(key)
    x = jax.random.normal(kx, (B, C, H, W), dtype=jnp.float32)
    conv_weight = jax.random.normal(kw, (kernel_size,), dtype=jnp.float32) * 0.5

    ref = _eca_reference(x, conv_weight, kernel_size)

    # 1) Fused single-pass path (auto, generation-aware tiling).
    out = jax.block_until_ready(eca_attention(x, conv_weight, kernel_size))
    assert out.shape == (B, C, H, W)
    assert jnp.allclose(out, ref, atol=1e-5, rtol=1e-5), "mismatch (fused)"

    # 2) Multi-step batch grid (b_tile=1).
    out2 = jax.block_until_ready(
        eca_attention(x, conv_weight, kernel_size, b_tile=1))
    assert jnp.allclose(out2, ref, atol=1e-5, rtol=1e-5), "mismatch (b_tile=1)"

    # 3) Two-pass HW-tiled path (forced; exercises the large-slab fallback).
    out3 = jax.block_until_ready(
        eca_attention(x, conv_weight, kernel_size,
                      force_two_pass=True, hw_tile=128))
    assert jnp.allclose(out3, ref, atol=1e-5, rtol=1e-5), "mismatch (two-pass)"

    # 4) Non-128-multiple spatial size (7x7): wrapper pads HW for lane-dense stores.
    x_small = jax.random.normal(kx, (2, C, 7, 7), dtype=jnp.float32)
    ref_small = _eca_reference(x_small, conv_weight, kernel_size)
    out4 = jax.block_until_ready(eca_attention(x_small, conv_weight, kernel_size))
    assert jnp.allclose(out4, ref_small, atol=1e-5, rtol=1e-5), "mismatch (7x7)"

    print("KERNEL_OK")
</pallas_src>

<mosaic_0001>
module attributes {stable_mosaic.version = 11 : i64} {
  func.func @_eca_fused_kernel(%arg0: i32, %arg1: memref<2x8x256xf32, #tpu.memory_space<vmem>>, %arg2: memref<3xf32, #tpu.memory_space<smem>>, %arg3: memref<2x8x256xf32, #tpu.memory_space<vmem>>) attributes {dimension_semantics = [#tpu.dimension_semantics<parallel>], iteration_bounds = array<i64: 2>, scalar_prefetch = 0 : i64, scratch_operands = 0 : i64, tpu.core_type = #tpu.core_type<tc>, window_params = [{transform_indices = @transform_0, window_bounds = array<i64: 2, 8, 256>}, {transform_indices = @transform_1, window_bounds = array<i64: 3>}, {transform_indices = @transform_2, window_bounds = array<i64: 2, 8, 256>}]} {
    %c0 = arith.constant 0 : index
    %c0_0 = arith.constant 0 : index
    %c0_1 = arith.constant 0 : index
    %0 = vector.load %arg1[%c0, %c0_0, %c0_1] : memref<2x8x256xf32, #tpu.memory_space<vmem>>, vector<2x8x256xf32>
    %cst = arith.constant dense<0.000000e+00> : vector<2x8xf32>
    %1 = vector.multi_reduction <add>, %0, %cst [2] : vector<2x8x256xf32> to vector<2x8xf32>
    %2 = vector.shape_cast %1 : vector<2x8xf32> to vector<2x8x1xf32>
    %cst_2 = arith.constant 3.906250e-03 : f32
    %3 = vector.broadcast %cst_2 : f32 to vector<2x8x1xf32>
    %4 = arith.mulf %2, %3 : vector<2x8x1xf32>
    %cst_3 = arith.constant 0.000000e+00 : f32
    %5 = vector.broadcast %cst_3 : f32 to vector<2x1x1xf32>
    %6 = tpu.concatenate %5, %4, %5 in 1 : vector<2x1x1xf32>, vector<2x8x1xf32>, vector<2x1x1xf32> -> vector<2x10x1xf32>
    %c0_4 = arith.constant 0 : index
    %7 = memref.load %arg2[%c0_4] : memref<3xf32, #tpu.memory_space<smem>>
    %8 = vector.extract_strided_slice %6 {offsets = [0, 0, 0], sizes = [2, 8, 1], strides = [1, 1, 1]} : vector<2x10x1xf32> to vector<2x8x1xf32>
    %9 = vector.broadcast %7 : f32 to vector<2x8x1xf32>
    %10 = arith.mulf %9, %8 : vector<2x8x1xf32>
    %c1 = arith.constant 1 : index
    %11 = memref.load %arg2[%c1] : memref<3xf32, #tpu.memory_space<smem>>
    %12 = vector.extract_strided_slice %6 {offsets = [0, 1, 0], sizes = [2, 8, 1], strides = [1, 1, 1]} : vector<2x10x1xf32> to vector<2x8x1xf32>
    %13 = vector.broadcast %11 : f32 to vector<2x8x1xf32>
    %14 = arith.mulf %13, %12 : vector<2x8x1xf32>
    %15 = arith.addf %10, %14 : vector<2x8x1xf32>
    %c2 = arith.constant 2 : index
    %16 = memref.load %arg2[%c2] : memref<3xf32, #tpu.memory_space<smem>>
    %17 = vector.extract_strided_slice %6 {offsets = [0, 2, 0], sizes = [2, 8, 1], strides = [1, 1, 1]} : vector<2x10x1xf32> to vector<2x8x1xf32>
    %18 = vector.broadcast %16 : f32 to vector<2x8x1xf32>
    %19 = arith.mulf %18, %17 : vector<2x8x1xf32>
    %20 = arith.addf %15, %19 : vector<2x8x1xf32>
    %21 = arith.negf %20 : vector<2x8x1xf32>
    %22 = math.exp %21 : vector<2x8x1xf32>
    %cst_5 = arith.constant 1.000000e+00 : f32
    %23 = vector.broadcast %cst_5 : f32 to vector<2x8x1xf32>
    %24 = arith.addf %23, %22 : vector<2x8x1xf32>
    %25 = arith.divf %23, %24 : vector<2x8x1xf32>
    %26 = vector.broadcast %25 : vector<2x8x1xf32> to vector<2x8x256xf32>
    %27 = arith.mulf %0, %26 : vector<2x8x256xf32>
    %c0_6 = arith.constant 0 : index
    %c0_7 = arith.constant 0 : index
    %c0_8 = arith.constant 0 : index
    %28 = vector.load %arg3[%c0_6, %c0_7, %c0_8] : memref<2x8x256xf32, #tpu.memory_space<vmem>>, vector<2x8x256xf32>
    tpu.vector_store %arg3[%c0_6, %c0_7, %c0_8], %27 {strides = array<i32>} : memref<2x8x256xf32, #tpu.memory_space<vmem>>, vector<2x8x256xf32>,
    return
  }
  func.func @transform_0(%arg0: i32) -> (i32, i32, i32) {
    %c0_i32 = arith.constant 0 : i32
    %c0_i32_0 = arith.constant 0 : i32
    %c0_i32_1 = arith.constant 0 : i32
    return %arg0, %c0_i32, %c0_i32_0 : i32, i32, i32
  }
  func.func @transform_1(%arg0: i32) -> i32 {
    %c0_i32 = arith.constant 0 : i32
    %c0_i32_0 = arith.constant 0 : i32
    return %c0_i32 : i32
  }
  func.func @transform_2(%arg0: i32) -> (i32, i32, i32) {
    %c0_i32 = arith.constant 0 : i32
    %c0_i32_0 = arith.constant 0 : i32
    %c0_i32_1 = arith.constant 0 : i32
    return %arg0, %c0_i32, %c0_i32_0 : i32, i32, i32
  }
}

</mosaic_0001>

<llo_original>
// kernel: tpu_custom_call.1
$region0: #{tpu_custom_call.1}
  #allocation0 [shape = 'u32[]', space=smem, size = 0x4, offset = 0x4, fixed_abs, tag = 'smem constant byte address 0x4 - core index']
  #allocation1 [shape = 'u32[72,128]{1,0:T(1,128)}', space=vmem, size = 0x9000, scoped, tag = 'internal scratch']
  %s0 = inlined_call_operand.hbm [shape: f32[4,8,256], index: 0, kind: input, shape index: {}]
  %s1 = inlined_call_operand.hbm [shape: f32[3], index: 1, kind: input, shape index: {}]
  %s2 = inlined_call_operand.hbm [shape: f32[4,8,256], index: 2, kind: output, shape index: {}]
  %s3 = sld [smem:[#allocation0]]
  $region49: #{tpu_custom_call.1} parent=0
    _
  %s5 = ssub.s32 1, %s3
  %s6 = scalar_select 0, %s5, %s3
  $region1: #{tpu_custom_call.1} parent=0
    #allocation2 [shape = 'u8[32768]{0}', space=vmem, size = 0x8000, scoped, tag = 'input window, operand 0']
    #allocation3 [shape = 's32[2]{0}', space=sflag, size = 0x8, scoped, tag = 'scoped memory for tpu_custom_call.1']
    #allocation4 [shape = 's32[2]{0}', space=sflag, size = 0x8, scoped, tag = 'scoped memory for tpu_custom_call.1']
    #allocation5 [shape = 's32[2]{0}', space=sflag, size = 0x8, scoped, tag = 'scoped memory for tpu_custom_call.1']
    #allocation6 [shape = 'u8[512]{0}', space=smem, size = 0x200, scoped, tag = 'input window, operand 1, single buffered']
    #allocation7 [shape = 'u8[32768]{0}', space=vmem, size = 0x8000, scoped, tag = 'output window, operand 0']
    %7 = vsyncpa [#allocation3], 0
    %s8 = scalar_lea.sflag [#allocation3], 1
    %9 = vsyncpa %s8, 0
    %10 = vsyncpa [#allocation5], 0
    %11 = vsyncpa [#allocation4], 0
    %s12 = scalar_lea.sflag [#allocation4], 1
    %13 = vsyncpa %s12, 0
    loop: start=0, step=1, limit=4
    $region2: #{tpu_custom_call.1} parent=1 // loop_pre_header
      _
    $region3: #{tpu_custom_call.1} parent=1 // loop_header
      %s15 = sphi 0, %s19
      %p16 = scmp.ge.s32.totalorder %s15, 4
      %s25 = sphi 0, %s27
      %s28 = sphi 0, %s25
      %s29 = sphi 0, %s28
      %s45 = sphi 0, %s29
      %s49 = sphi 0, %s49
      %s51 = sphi 0, %s49
      %s52 = sphi 0, %s51
      %s66 = sphi 0, %s52
      %s72 = sphi 0, %s74
      %s75 = sphi 0, %s72
      %s76 = sphi 0, %s75
      %s92 = sphi 0, %s76
    $region4: #{tpu_custom_call.1} parent=1 // loop_header_branch
      %18 = sbr.rel (%p16) target = $region8
    $region5: #{tpu_custom_call.1} parent=1 // loop_body
      %s20 = ssub.s32 %s15, 1
      %s21 = ssub.s32 %s15, 2
      %s22 = sadd.s32 %s15, 1
      %s23 = ssub.s32 %s15, %s22
      %p24 = scmp.eq.s32.totalorder %s23, 0
      %s26 = sadd.s32 %s25, 1
      %s27 = scalar_select %p24, %s25, %s26
      %p30 = pneg %p24
      %p31 = scmp.eq.s32.totalorder %s15, 1
      %p32 = por %p30, %p31
      %p33 = scmp.ne.s32.totalorder %s25, %s28
      %p34 = scmp.eq.s32.totalorder %s15, 0
      %p35 = por %p33, %p34
      %p36 = scmp.ne.s32.totalorder %s25, %s28
      %p37 = scmp.eq.s32.totalorder %s20, 1
      %p38 = por %p36, %p37
      %p39 = scmp.ne.s32.totalorder %s28, %s29
      %p40 = scmp.eq.s32.totalorder %s20, 0
      %p41 = por %p39, %p40
      %p42 = scmp.ne.s32.totalorder %s28, %s29
      %p43 = scmp.eq.s32.totalorder %s21, 1
      %p44 = por %p42, %p43
      %p46 = scmp.ne.s32.totalorder %s29, %s45
      %p47 = scmp.eq.s32.totalorder %s21, 0
      %p48 = por %p46, %p47
      %s50 = sadd.s32 %s49, 1
      %p53 = scmp.eq.s32.totalorder %s15, 1
      %p54 = scmp.ne.s32.totalorder %s49, %s51
      %p55 = scmp.eq.s32.totalorder %s15, 0
      %p56 = por %p54, %p55
      %p57 = scmp.ne.s32.totalorder %s49, %s51
      %p58 = scmp.eq.s32.totalorder %s20, 1
      %p59 = por %p57, %p58
      %p60 = scmp.ne.s32.totalorder %s51, %s52
      %p61 = scmp.eq.s32.totalorder %s20, 0
      %p62 = por %p60, %p61
      %p63 = scmp.ne.s32.totalorder %s51, %s52
      %p64 = scmp.eq.s32.totalorder %s21, 1
      %p65 = por %p63, %p64
      %p67 = scmp.ne.s32.totalorder %s52, %s66
      %p68 = scmp.eq.s32.totalorder %s21, 0
      %p69 = por %p67, %p68
      %s70 = ssub.s32 %s15, %s22
      %p71 = scmp.eq.s32.totalorder %s70, 0
      %s73 = sadd.s32 %s72, 1
      %s74 = scalar_select %p71, %s72, %s73
      %p77 = pneg %p71
      %p78 = scmp.eq.s32.totalorder %s15, 1
      %p79 = por %p77, %p78
      %p80 = scmp.ne.s32.totalorder %s72, %s75
      %p81 = scmp.eq.s32.totalorder %s15, 0
      %p82 = por %p80, %p81
      %p83 = scmp.ne.s32.totalorder %s72, %s75
      %p84 = scmp.eq.s32.totalorder %s20, 1
      %p85 = por %p83, %p84
      %p86 = scmp.ne.s32.totalorder %s75, %s76
      %p87 = scmp.eq.s32.totalorder %s20, 0
      %p88 = por %p86, %p87
      %p89 = scmp.ne.s32.totalorder %s75, %s76
      %p90 = scmp.eq.s32.totalorder %s21, 1
      %p91 = por %p89, %p90
      %p93 = scmp.ne.s32.totalorder %s76, %s92
      %p94 = scmp.eq.s32.totalorder %s21, 0
      %p95 = por %p93, %p94
      %p96 = scmp.le.s32.totalorder 1, %s15
      %p97 = scmp.lt.s32.totalorder %s15, 3
      %p98 = pnand %p96, %p97
      %p99 = pneg %p98
      // Predicated region
      $region9: #{tpu_custom_call.1} parent=5 // pred_check
        _
      $region10: #{tpu_custom_call.1} parent=5 // pred_check_branch
        %101 = sbr.rel (%p98) target = $region12
      $region11: #{tpu_custom_call.1} parent=5 // pred_region
        %s102 = ssub.s32 %s15, 1
        // Predicated region
        $region13: #{tpu_custom_call.1} parent=11 // pred_check
          %p103 = pneg %p62
        $region14: #{tpu_custom_call.1} parent=11 // pred_check_branch
          %105 = sbr.rel (%p103) target = $region16
        $region15: #{tpu_custom_call.1} parent=11 // pred_region
          %107 = vsyncadd [#allocation5], 0
          %s109 = sshll.u32 %s1, 4
          %s110 = int_to_ptr.hbm [resolvable:$true] %s109
          %112 = dma.hbm_to_smem %s110, 16, [#allocation6], [#allocation5]
        $region16: #{tpu_custom_call.1} parent=11 // pred_fallthru
          _
      $region12: #{tpu_custom_call.1} parent=5 // pred_fallthru
        _
      %p113 = scmp.lt.s32.totalorder %s15, 2
      // Predicated region
      $region17: #{tpu_custom_call.1} parent=5 // pred_check
        %p114 = pneg %p113
      $region18: #{tpu_custom_call.1} parent=5 // pred_check_branch
        %116 = sbr.rel (%p114) target = $region20
      $region19: #{tpu_custom_call.1} parent=5 // pred_region
        // Predicated region
        $region21: #{tpu_custom_call.1} parent=19 // pred_check
          %p117 = pneg %p35
        $region22: #{tpu_custom_call.1} parent=19 // pred_check_branch
          %119 = sbr.rel (%p117) target = $region24
        $region23: #{tpu_custom_call.1} parent=19 // pred_region
          %s120 = sand.u32 %s25, 1
          %s121 = scalar_lea.sflag [#allocation3], %s120
          %s122 = sand.u32 %s25, 1
          %s123 = smul.addr %s122, 32
          %s124 = scalar_lea.vmem [#allocation2], %s123
          %s125 = smul.u32 2, %s15
          %127 = vsyncadd %s121, 0
          %s128 = smul.addr %s125, 2
          %s129 = smul.addr %s128, 8
          %s130 = scalar_lea.hbm %s0, %s129
          %s131 = sshll.u32 %s130, 4
          %s132 = int_to_ptr.hbm [resolvable:$true] %s131
          %s133 = sshll.u32 %s124, 4
          %s134 = int_to_ptr.vmem [resolvable:$true] %s133
          %139 = dma.hbm_to_vmem [thread:$0]  %s132, 512, %s134, %s121, 256, 256, 16
        $region24: #{tpu_custom_call.1} parent=19 // pred_fallthru
          _
      $region20: #{tpu_custom_call.1} parent=5 // pred_fallthru
        _
      %p140 = scmp.le.s32.totalorder 1, %s15
      %p141 = scmp.lt.s32.totalorder %s15, 3
      %p142 = pnand %p140, %p141
      %p143 = pneg %p142
      // Predicated region
      $region25: #{tpu_custom_call.1} parent=5 // pred_check
        _
      $region26: #{tpu_custom_call.1} parent=5 // pred_check_branch
        %145 = sbr.rel (%p142) target = $region28
      $region27: #{tpu_custom_call.1} parent=5 // pred_region
        %s146 = ssub.s32 %s15, 1
        %s147 = sand.u32 %s28, 1
        %s148 = scalar_lea.sflag [#allocation3], %s147
        %s149 = sand.u32 %s28, 1
        %s150 = smul.addr %s149, 32
        %s151 = scalar_lea.vmem [#allocation2], %s150
        // Predicated region
        $region29: #{tpu_custom_call.1} parent=27 // pred_check
          %p152 = pneg %p41
        $region30: #{tpu_custom_call.1} parent=27 // pred_check_branch
          %154 = sbr.rel (%p152) target = $region32
        $region31: #{tpu_custom_call.1} parent=27 // pred_region
          %156 = dma.done %s148, 512
        $region32: #{tpu_custom_call.1} parent=27 // pred_fallthru
          _
        // Predicated region
        $region33: #{tpu_custom_call.1} parent=27 // pred_check
          %p157 = pneg %p62
        $region34: #{tpu_custom_call.1} parent=27 // pred_check_branch
          %159 = sbr.rel (%p157) target = $region36
        $region35: #{tpu_custom_call.1} parent=27 // pred_region
          %161 = dma.done [#allocation5], 16
        $region36: #{tpu_custom_call.1} parent=27 // pred_fallthru
          _
        %162 = sfence
        %s163 = sand.u32 %s28, 1
        %s164 = scalar_lea.sflag [#allocation3], %s163
        %s165 = sand.u32 %s28, 1
        %s166 = smul.addr %s165, 32
        %s167 = scalar_lea.vmem [#allocation2], %s166
        %p168 = pneg %p41
        %p169 = pneg %p38
        %p170 = pneg %p62
        %p171 = pneg %p59
        %p172 = pneg %p88
        %p173 = pneg %p85
        %s174 = sand.u32 %s75, 1
        %s175 = scalar_lea.sflag [#allocation4], %s174
        %s176 = sand.u32 %s75, 1
        %s177 = smul.addr %s176, 32
        %s178 = scalar_lea.vmem [#allocation7], %s177
        %s179 = smul.u32 2, %s20
        %s180 = smul.u32 2, %s20
        %v181 = vld [vmem:[%s151] sm:$0xff]
        %v182 = vld [vmem:[%s151 + $0x8] sm:$0xff]
        %v183 = vld [vmem:[%s151 + $0x10] sm:$0xff]
        %v184 = vld [vmem:[%s151 + $0x18] sm:$0xff]
        %v185 = vadd.f32 %v181, %v182
        %186 = vadd.xlane.f32.xlu0 %v185
        %v187 = vpop.xlane.xlu0 %186
        %v188 = vadd.f32 %v183, %v184
        %189 = vadd.xlane.f32.xlu0 %v188
        %v190 = vpop.xlane.xlu0 %189
        %v191 = vmul.f32 %v187, 0.00390625
        %v192 = vmul.f32 %v190, 0.00390625
        %v195 = vrot.slane %v191, 7
        %v196 = vrot.slane %v192, 7
        %vm199 = vcmask 1040384
        %v200 = vsel %vm199, 0.0, %v195
        %v201 = vsel %vm199, 0.0, %v196
        %v202 = vsel %vm199, %v195, 0.0
        %v203 = vsel %vm199, %v196, 0.0
        %s204 = sld [smem:[#allocation6]]
        %v205 = vstv %s204
        %v206 = vmul.f32 %v205, %v200
        %v207 = vmul.f32 %v205, %v201
        %s208 = sld [smem:[#allocation6 + $0x1]]
        %v209 = vstv %s208
        %v210 = vmul.f32 %v209, %v200
        %v211 = vmul.f32 %v209, %v202
        %v212 = vmul.f32 %v209, %v201
        %v213 = vmul.f32 %v209, %v203
        %vm218 = vcmask 1046528
        %v219 = vrot.slane %v210, 1
        %v220 = vrot.slane %v211, 1
        %v221 = vsel %vm218, %v219, %v220
        %v222 = vrot.slane %v212, 1
        %v223 = vrot.slane %v213, 1
        %v224 = vsel %vm218, %v222, %v223
        %v227 = vadd.f32 %v206, %v221
        %v228 = vadd.f32 %v207, %v224
        %s229 = sld [smem:[#allocation6 + $0x2]]
        %v230 = vstv %s229
        %v231 = vmul.f32 %v230, %v200
        %v232 = vmul.f32 %v230, %v202
        %v233 = vmul.f32 %v230, %v201
        %v234 = vmul.f32 %v230, %v203
        %vm239 = vcmask 1045504
        %v240 = vrot.slane %v231, 2
        %v241 = vrot.slane %v232, 2
        %v242 = vsel %vm239, %v240, %v241
        %v243 = vrot.slane %v233, 2
        %v244 = vrot.slane %v234, 2
        %v245 = vsel %vm239, %v243, %v244
        %v248 = vadd.f32 %v227, %v242
        %v249 = vadd.f32 %v228, %v245
        %v250 = vxor.u32 %v248, 2147483648
        %v251 = vxor.u32 %v249, 2147483648
        %v252 = vmul.f32 %v250, 1.442695
        %v253 = vpow.pop %v252
        %v254 = vmul.f32 %v251, 1.442695
        %v255 = vpow.pop %v254
        %v256 = vadd.f32 %v253, 1.0
        %v257 = vadd.f32 %v255, 1.0
        %v258 = vrcp.pop %v256
        %v259 = vmul.f32 %v256, %v258
        %v260 = vsub.f32 1.0, %v259
        %v261 = vmul.f32 %v258, %v260
        %v262 = vadd.f32 %v258, %v261
        %vm263 = vweird.f32 %v256
        %vm264 = vweird.f32 %v258
        %vm265 = vmor %vm263, %vm264
        %v266 = vsel %vm265, %v258, %v262
        %v267 = vand.u32 2147483647, %v256
        %vm268 = vcmp.eq.f32.partialorder %v267, 8.507059e+37
        %v269 = vand.u32 %v256, 2147483648
        %v270 = vor.u32 1.1754944e-38, %v269
        %v271 = vsel %vm268, %v270, %v266
        %v272 = vmul.f32 1.0, %v271
        %v273 = vrcp.pop %v257
        %v274 = vmul.f32 %v257, %v273
        %v275 = vsub.f32 1.0, %v274
        %v276 = vmul.f32 %v273, %v275
        %v277 = vadd.f32 %v273, %v276
        %vm278 = vweird.f32 %v257
        %vm279 = vweird.f32 %v273
        %vm280 = vmor %vm278, %vm279
        %v281 = vsel %vm280, %v273, %v277
        %v282 = vand.u32 2147483647, %v257
        %vm283 = vcmp.eq.f32.partialorder %v282, 8.507059e+37
        %v284 = vand.u32 %v257, 2147483648
        %v285 = vor.u32 1.1754944e-38, %v284
        %v286 = vsel %vm283, %v285, %v281
        %v287 = vmul.f32 1.0, %v286
        %289 = vset.pattern.permute.xlu0 0
        %290 = vperm.xlu0 %289, %v272
        %v291 = vpop.permute.xlu0 %290
        %294 = vset.pattern.permute.xlu0 0
        %295 = vperm.xlu0 %294, %v287
        %v296 = vpop.permute.xlu0 %295
        %v298 = vmul.f32 %v181, %v291
        %v299 = vmul.f32 %v182, %v291
        %v300 = vmul.f32 %v183, %v296
        %v301 = vmul.f32 %v184, %v296
        %302 = vst [vmem:[%s178] sm:$0xff] %v298
        %303 = vst [vmem:[%s178 + $0x8] sm:$0xff] %v299
        %304 = vst [vmem:[%s178 + $0x10] sm:$0xff] %v300
        %305 = vst [vmem:[%s178 + $0x18] sm:$0xff] %v301
        %s306 = sand.u32 %s75, 1
        %s307 = scalar_lea.sflag [#allocation4], %s306
        %s308 = sand.u32 %s75, 1
        %s309 = smul.addr %s308, 32
        %s310 = scalar_lea.vmem [#allocation7], %s309
        // Predicated region
        $region37: #{tpu_custom_call.1} parent=27 // pred_check
          %p311 = pneg %p85
        $region38: #{tpu_custom_call.1} parent=27 // pred_check_branch
          %313 = sbr.rel (%p311) target = $region40
        $region39: #{tpu_custom_call.1} parent=27 // pred_region
          %s314 = smul.u32 2, %s20
          %316 = vsyncadd %s307, 0
          %s317 = smul.addr %s314, 2
          %s318 = smul.addr %s317, 8
          %s319 = scalar_lea.hbm %s2, %s318
          %s320 = sshll.u32 %s310, 4
          %s321 = int_to_ptr.vmem [resolvable:$true] %s320
          %s322 = sshll.u32 %s319, 4
          %s323 = int_to_ptr.hbm [resolvable:$true] %s322
          %328 = dma.vmem_to_hbm [thread:$0]  %s321, 512, %s323, %s307, 256, 256, 16
        $region40: #{tpu_custom_call.1} parent=27 // pred_fallthru
          _
      $region28: #{tpu_custom_call.1} parent=5 // pred_fallthru
        _
      %p329 = scmp.le.s32.totalorder 2, %s15
      // Predicated region
      $region41: #{tpu_custom_call.1} parent=5 // pred_check
        %p330 = pneg %p329
      $region42: #{tpu_custom_call.1} parent=5 // pred_check_branch
        %332 = sbr.rel (%p330) target = $region44
      $region43: #{tpu_custom_call.1} parent=5 // pred_region
        %s333 = ssub.s32 %s15, 2
        // Predicated region
        $region45: #{tpu_custom_call.1} parent=43 // pred_check
          %p334 = pneg %p91
        $region46: #{tpu_custom_call.1} parent=43 // pred_check_branch
          %336 = sbr.rel (%p334) target = $region48
        $region47: #{tpu_custom_call.1} parent=43 // pred_region
          %s337 = sand.u32 %s76, 1
          %s338 = scalar_lea.sflag [#allocation4], %s337
          %s339 = sand.u32 %s76, 1
          %s340 = smul.addr %s339, 32
          %s341 = scalar_lea.vmem [#allocation7], %s340
          %343 = dma.done %s338, 512
        $region48: #{tpu_custom_call.1} parent=43 // pred_fallthru
          _
      $region44: #{tpu_custom_call.1} parent=5 // pred_fallthru
        _
    $region6: #{tpu_custom_call.1} parent=1 // loop_footer
      %s19 = sadd.s32 1, %s15
    $region7: #{tpu_custom_call.1} parent=1 // loop_footer_branch
      %14 = sbr.rel target = $region3
    $region8: #{tpu_custom_call.1} parent=1 // loop_exit
      _
    %344 = vsyncpa [#allocation3], 1
    %s345 = scalar_lea.sflag [#allocation3], 1
    %346 = vsyncpa %s345, 1
    %347 = vsyncpa [#allocation4], 1
    %s348 = scalar_lea.sflag [#allocation4], 1
    %349 = vsyncpa %s348, 1
    %350 = vsyncpa [#allocation5], 1
    %s351 = scalar_lea.sflag [#allocation5], 1
    %352 = vsyncpa %s351, 1

</llo_original>
